<compile_context>
chip_gen: v5e
topology: v5e:2x2
jax: 0.10.0
libtpu: 0.0.40
codegen_flags: <defaults>
</compile_context>

<pallas_src>
import jax
import jax.numpy as jnp
from jax.experimental import pallas as pl
from jax.experimental.pallas import tpu as pltpu

LEAKY_SLOPE = 0.01   # PyTorch nn.LeakyReLU default negative_slope
_MAX_TB = 256        # max batch-tile rows per grid step (fits easily in VMEM
                     # on v7x's 64 MiB and fills the 256-tall v6e/v7x MXU)


# ----------------------------- Pallas kernel --------------------------------
def _mlp_kernel(x_ref, a_ref,
                w1x_ref, w1a_ref,        # bf16 [in_dim,H], [n_act*2,H]
                bh_ref,                  # f32  [3,H]  (b1,b2,b3)
                wh_ref,                  # bf16 [2,H,H] (w2,w3)
                w4_ref, b4_ref,          # bf16 [H,out], f32 [1,out]
                o_ref):
    """Whole 4-layer MLP for one batch tile; weights are VMEM-resident."""

    def leaky(h):                        # f32 VPU math on every chip
        return jnp.maximum(h, LEAKY_SLOPE * h)

    bf16 = jnp.bfloat16

    # Layer 1: fused concat -> two bf16 MXU dots, f32 accumulation.
    h = jnp.dot(x_ref[...].astype(bf16), w1x_ref[...],
                preferred_element_type=jnp.float32)
    h = h + jnp.dot(a_ref[...].astype(bf16), w1a_ref[...],
                    preferred_element_type=jnp.float32)
    h = leaky(h + bh_ref[0:1, :])

    # Hidden layers 2 and 3 (stacked weights).
    h = leaky(jnp.dot(h.astype(bf16), wh_ref[0],
                      preferred_element_type=jnp.float32) + bh_ref[1:2, :])
    h = leaky(jnp.dot(h.astype(bf16), wh_ref[1],
                      preferred_element_type=jnp.float32) + bh_ref[2:3, :])

    # Output layer (no activation).
    o_ref[...] = jnp.dot(h.astype(bf16), w4_ref[...],
                         preferred_element_type=jnp.float32) + b4_ref[...]


# ------------------------------- wrapper -------------------------------------
@jax.jit
def network_forward(x, a, prep):
    """Equivalent of Network.forward(x, a) with pre-prepared params.

    x: [B, in_dim] f32, a: [B, n_actions*2] f32 -> y: [B, out_dim] f32
    """
    B, in_dim = x.shape
    na2 = a.shape[1]
    out_dim = prep["w4"].shape[-1]

    # Batch tile: full batch if small, otherwise _MAX_TB rows per grid step
    # (B and TB are static under jit).
    TB = B if B <= _MAX_TB else _MAX_TB
    grid = (pl.cdiv(B, TB),)

    def resident(arr):  # full-array block, constant index -> stays in VMEM
        return pl.BlockSpec(arr.shape, lambda i, _nd=arr.ndim: (0,) * _nd)

    return pl.pallas_call(
        _mlp_kernel,
        out_shape=jax.ShapeDtypeStruct((B, out_dim), jnp.float32),
        grid=grid,
        in_specs=[
            pl.BlockSpec((TB, in_dim), lambda i: (i, 0)),   # x tile
            pl.BlockSpec((TB, na2), lambda i: (i, 0)),      # a tile
            resident(prep["w1x"]),
            resident(prep["w1a"]),
            resident(prep["bh"]),
            resident(prep["wh"]),
            resident(prep["w4"]),
            resident(prep["b4"]),
        ],
        out_specs=pl.BlockSpec((TB, out_dim), lambda i: (i, 0)),
        compiler_params=pltpu.CompilerParams(
            dimension_semantics=("parallel",)),
    )(x, a, prep["w1x"], prep["w1a"], prep["bh"], prep["wh"],
      prep["w4"], prep["b4"])


# ---------------------------- parameter setup --------------------------------
def init_params(key, in_dim, n_actions, n_neurons, out_dim):
    """Synthetic init; shapes match the PyTorch module (n_layers=0)."""
    d0 = in_dim + n_actions * 2
    dims = [(d0, n_neurons), (n_neurons, n_neurons),
            (n_neurons, n_neurons), (n_neurons, out_dim)]
    params = {}
    for i, (din, dout) in enumerate(dims, start=1):
        key, kw, kb = jax.random.split(key, 3)
        scale = 1.0 / jnp.sqrt(jnp.float32(din))
        params[f"w{i}"] = jax.random.uniform(
            kw, (din, dout), jnp.float32, minval=-scale, maxval=scale)
        params[f"b{i}"] = jax.random.uniform(
            kb, (dout,), jnp.float32, minval=-scale, maxval=scale)
    return params


def prepare_params(params, in_dim):
    """One-time transform: split w1 (fused concat), bf16 weights, stack hidden."""
    bf16 = jnp.bfloat16
    w1 = params["w1"]
    return {
        "w1x": w1[:in_dim, :].astype(bf16),            # [in_dim, H]
        "w1a": w1[in_dim:, :].astype(bf16),            # [n_act*2, H]
        "wh": jnp.stack([params["w2"], params["w3"]]).astype(bf16),  # [2,H,H]
        "bh": jnp.stack([params["b1"], params["b2"],
                         params["b3"]]).astype(jnp.float32),         # [3,H]
        "w4": params["w4"].astype(bf16),               # [H, out_dim]
        "b4": params["b4"].astype(jnp.float32)[None, :],             # [1,out_dim]
    }


def reference_forward(x, a, params):
    """Pure-JAX reference emulating the kernel's bf16-at-MXU / f32-accumulate."""
    def dot_bf16(h, w):
        return jnp.dot(h.astype(jnp.bfloat16), w.astype(jnp.bfloat16),
                       preferred_element_type=jnp.float32)
    h = jnp.concatenate([x, a], axis=-1).astype(jnp.float32)
    for i in range(1, 4):
        h = dot_bf16(h, params[f"w{i}"]) + params[f"b{i}"]
        h = jnp.maximum(h, LEAKY_SLOPE * h)
    return dot_bf16(h, params["w4"]) + params["b4"]


# --------------------------------- main --------------------------------------
if __name__ == "__main__":
    # module hyper-params
    t_steps = 4          # n_actions
    n_neurons = 128
    in_dim = 117         # subset == 0, neither dlo_only nor obj_only
    out_dim = 78

    batch = 8

    key = jax.random.PRNGKey(0)
    kx, ka, kp = jax.random.split(key, 3)

    x = jax.random.normal(kx, (batch, in_dim), jnp.float32)
    a = jax.random.normal(ka, (batch, t_steps * 2), jnp.float32)
    params = init_params(kp, in_dim, t_steps, n_neurons, out_dim)
    prep = prepare_params(params, in_dim)     # one-time, outside the hot path

    y = network_forward(x, a, prep)
    y = jax.block_until_ready(y)

    y_ref = reference_forward(x, a, params)
    assert y.shape == (batch, out_dim)
    max_err = float(jnp.max(jnp.abs(y - y_ref)))
    assert max_err < 5e-3, f"mismatch vs reference (max abs err {max_err})"

    print("KERNEL_OK")
</pallas_src>

<mosaic_0001>
module attributes {stable_mosaic.version = 11 : i64} {
  func.func @_mlp_kernel(%arg0: i32, %arg1: memref<8x117xf32, #tpu.memory_space<vmem>>, %arg2: memref<8x8xf32, #tpu.memory_space<vmem>>, %arg3: memref<117x128xbf16, #tpu.memory_space<vmem>>, %arg4: memref<8x128xbf16, #tpu.memory_space<vmem>>, %arg5: memref<3x128xf32, #tpu.memory_space<vmem>>, %arg6: memref<2x128x128xbf16, #tpu.memory_space<vmem>>, %arg7: memref<128x78xbf16, #tpu.memory_space<vmem>>, %arg8: memref<1x78xf32, #tpu.memory_space<vmem>>, %arg9: memref<8x78xf32, #tpu.memory_space<vmem>>) attributes {dimension_semantics = [#tpu.dimension_semantics<parallel>], iteration_bounds = array<i64: 1>, scalar_prefetch = 0 : i64, scratch_operands = 0 : i64, tpu.core_type = #tpu.core_type<tc>, window_params = [{transform_indices = @transform_0, window_bounds = array<i64: 8, 117>}, {transform_indices = @transform_1, window_bounds = array<i64: 8, 8>}, {pipeline_mode = #tpu.pipeline_mode<synchronous>, transform_indices = @transform_2, window_bounds = array<i64: 117, 128>}, {pipeline_mode = #tpu.pipeline_mode<synchronous>, transform_indices = @transform_3, window_bounds = array<i64: 8, 128>}, {pipeline_mode = #tpu.pipeline_mode<synchronous>, transform_indices = @transform_4, window_bounds = array<i64: 3, 128>}, {pipeline_mode = #tpu.pipeline_mode<synchronous>, transform_indices = @transform_5, window_bounds = array<i64: 2, 128, 128>}, {pipeline_mode = #tpu.pipeline_mode<synchronous>, transform_indices = @transform_6, window_bounds = array<i64: 128, 78>}, {pipeline_mode = #tpu.pipeline_mode<synchronous>, transform_indices = @transform_7, window_bounds = array<i64: 1, 78>}, {transform_indices = @transform_8, window_bounds = array<i64: 8, 78>}]} {
    %c0 = arith.constant 0 : index
    %c0_0 = arith.constant 0 : index
    %0 = vector.load %arg1[%c0, %c0_0] : memref<8x117xf32, #tpu.memory_space<vmem>>, vector<8x117xf32>
    %1 = arith.truncf %0 : vector<8x117xf32> to vector<8x117xbf16>
    %c0_1 = arith.constant 0 : index
    %c0_2 = arith.constant 0 : index
    %2 = vector.load %arg3[%c0_1, %c0_2] : memref<117x128xbf16, #tpu.memory_space<vmem>>, vector<117x128xbf16>
    %cst = arith.constant dense<0.000000e+00> : vector<8x128xf32>
    %3 = tpu.matmul %1, %2, %cst {dimension_numbers = #tpu.dot_dimension_numbers<[1], [0], [0], [1], [0, 0, 1, 1], [], []>} : vector<8x117xbf16>, vector<117x128xbf16>, vector<8x128xf32> -> vector<8x128xf32>
    %c0_3 = arith.constant 0 : index
    %c0_4 = arith.constant 0 : index
    %4 = vector.load %arg2[%c0_3, %c0_4] : memref<8x8xf32, #tpu.memory_space<vmem>>, vector<8x8xf32>
    %5 = arith.truncf %4 : vector<8x8xf32> to vector<8x8xbf16>
    %c0_5 = arith.constant 0 : index
    %c0_6 = arith.constant 0 : index
    %6 = vector.load %arg4[%c0_5, %c0_6] : memref<8x128xbf16, #tpu.memory_space<vmem>>, vector<8x128xbf16>
    %cst_7 = arith.constant dense<0.000000e+00> : vector<8x128xf32>
    %7 = tpu.matmul %5, %6, %cst_7 {dimension_numbers = #tpu.dot_dimension_numbers<[1], [0], [0], [1], [0, 0, 1, 1], [], []>} : vector<8x8xbf16>, vector<8x128xbf16>, vector<8x128xf32> -> vector<8x128xf32>
    %8 = arith.addf %3, %7 : vector<8x128xf32>
    %c0_8 = arith.constant 0 : index
    %c0_9 = arith.constant 0 : index
    %9 = vector.load %arg5[%c0_8, %c0_9] : memref<3x128xf32, #tpu.memory_space<vmem>>, vector<1x128xf32>
    %10 = vector.broadcast %9 : vector<1x128xf32> to vector<8x128xf32>
    %11 = arith.addf %8, %10 : vector<8x128xf32>
    %cst_10 = arith.constant 0.00999999977 : f32
    %12 = vector.broadcast %cst_10 : f32 to vector<8x128xf32>
    %13 = arith.mulf %12, %11 : vector<8x128xf32>
    %14 = arith.maximumf %11, %13 : vector<8x128xf32>
    %15 = arith.truncf %14 : vector<8x128xf32> to vector<8x128xbf16>
    %c0_11 = arith.constant 0 : index
    %c0_12 = arith.constant 0 : index
    %c0_13 = arith.constant 0 : index
    %16 = vector.load %arg6[%c0_11, %c0_12, %c0_13] : memref<2x128x128xbf16, #tpu.memory_space<vmem>>, vector<1x128x128xbf16>
    %17 = vector.shape_cast %16 : vector<1x128x128xbf16> to vector<128x128xbf16>
    %cst_14 = arith.constant dense<0.000000e+00> : vector<8x128xf32>
    %18 = tpu.matmul %15, %17, %cst_14 {dimension_numbers = #tpu.dot_dimension_numbers<[1], [0], [0], [1], [0, 0, 1, 1], [], []>} : vector<8x128xbf16>, vector<128x128xbf16>, vector<8x128xf32> -> vector<8x128xf32>
    %c1 = arith.constant 1 : index
    %c0_15 = arith.constant 0 : index
    %19 = vector.load %arg5[%c1, %c0_15] : memref<3x128xf32, #tpu.memory_space<vmem>>, vector<1x128xf32>
    %20 = vector.broadcast %19 : vector<1x128xf32> to vector<8x128xf32>
    %21 = arith.addf %18, %20 : vector<8x128xf32>
    %cst_16 = arith.constant 0.00999999977 : f32
    %22 = vector.broadcast %cst_16 : f32 to vector<8x128xf32>
    %23 = arith.mulf %22, %21 : vector<8x128xf32>
    %24 = arith.maximumf %21, %23 : vector<8x128xf32>
    %25 = arith.truncf %24 : vector<8x128xf32> to vector<8x128xbf16>
    %c1_17 = arith.constant 1 : index
    %c0_18 = arith.constant 0 : index
    %c0_19 = arith.constant 0 : index
    %26 = vector.load %arg6[%c1_17, %c0_18, %c0_19] : memref<2x128x128xbf16, #tpu.memory_space<vmem>>, vector<1x128x128xbf16>
    %27 = vector.shape_cast %26 : vector<1x128x128xbf16> to vector<128x128xbf16>
    %cst_20 = arith.constant dense<0.000000e+00> : vector<8x128xf32>
    %28 = tpu.matmul %25, %27, %cst_20 {dimension_numbers = #tpu.dot_dimension_numbers<[1], [0], [0], [1], [0, 0, 1, 1], [], []>} : vector<8x128xbf16>, vector<128x128xbf16>, vector<8x128xf32> -> vector<8x128xf32>
    %c2 = arith.constant 2 : index
    %c0_21 = arith.constant 0 : index
    %29 = vector.load %arg5[%c2, %c0_21] : memref<3x128xf32, #tpu.memory_space<vmem>>, vector<1x128xf32>
    %30 = vector.broadcast %29 : vector<1x128xf32> to vector<8x128xf32>
    %31 = arith.addf %28, %30 : vector<8x128xf32>
    %cst_22 = arith.constant 0.00999999977 : f32
    %32 = vector.broadcast %cst_22 : f32 to vector<8x128xf32>
    %33 = arith.mulf %32, %31 : vector<8x128xf32>
    %34 = arith.maximumf %31, %33 : vector<8x128xf32>
    %35 = arith.truncf %34 : vector<8x128xf32> to vector<8x128xbf16>
    %c0_23 = arith.constant 0 : index
    %c0_24 = arith.constant 0 : index
    %36 = vector.load %arg7[%c0_23, %c0_24] : memref<128x78xbf16, #tpu.memory_space<vmem>>, vector<128x78xbf16>
    %cst_25 = arith.constant dense<0.000000e+00> : vector<8x78xf32>
    %37 = tpu.matmul %35, %36, %cst_25 {dimension_numbers = #tpu.dot_dimension_numbers<[1], [0], [0], [1], [0, 0, 1, 1], [], []>} : vector<8x128xbf16>, vector<128x78xbf16>, vector<8x78xf32> -> vector<8x78xf32>
    %c0_26 = arith.constant 0 : index
    %c0_27 = arith.constant 0 : index
    %38 = vector.load %arg8[%c0_26, %c0_27] : memref<1x78xf32, #tpu.memory_space<vmem>>, vector<1x78xf32>
    %39 = vector.broadcast %38 : vector<1x78xf32> to vector<8x78xf32>
    %40 = arith.addf %37, %39 : vector<8x78xf32>
    %c0_28 = arith.constant 0 : index
    %c0_29 = arith.constant 0 : index
    %41 = vector.load %arg9[%c0_28, %c0_29] : memref<8x78xf32, #tpu.memory_space<vmem>>, vector<8x78xf32>
    tpu.vector_store %arg9[%c0_28, %c0_29], %40 {strides = array<i32>} : memref<8x78xf32, #tpu.memory_space<vmem>>, vector<8x78xf32>,
    return
  }
  func.func @transform_0(%arg0: i32) -> (i32, i32) {
    %c0_i32 = arith.constant 0 : i32
    %c0_i32_0 = arith.constant 0 : i32
    return %arg0, %c0_i32 : i32, i32
  }
  func.func @transform_1(%arg0: i32) -> (i32, i32) {
    %c0_i32 = arith.constant 0 : i32
    %c0_i32_0 = arith.constant 0 : i32
    return %arg0, %c0_i32 : i32, i32
  }
  func.func @transform_2(%arg0: i32) -> (i32, i32) {
    %c0_i32 = arith.constant 0 : i32
    %c0_i32_0 = arith.constant 0 : i32
    %c0_i32_1 = arith.constant 0 : i32
    return %c0_i32, %c0_i32_0 : i32, i32
  }
  func.func @transform_3(%arg0: i32) -> (i32, i32) {
    %c0_i32 = arith.constant 0 : i32
    %c0_i32_0 = arith.constant 0 : i32
    %c0_i32_1 = arith.constant 0 : i32
    return %c0_i32, %c0_i32_0 : i32, i32
  }
  func.func @transform_4(%arg0: i32) -> (i32, i32) {
    %c0_i32 = arith.constant 0 : i32
    %c0_i32_0 = arith.constant 0 : i32
    %c0_i32_1 = arith.constant 0 : i32
    return %c0_i32, %c0_i32_0 : i32, i32
  }
  func.func @transform_5(%arg0: i32) -> (i32, i32, i32) {
    %c0_i32 = arith.constant 0 : i32
    %c0_i32_0 = arith.constant 0 : i32
    %c0_i32_1 = arith.constant 0 : i32
    %c0_i32_2 = arith.constant 0 : i32
    return %c0_i32, %c0_i32_0, %c0_i32_1 : i32, i32, i32
  }
  func.func @transform_6(%arg0: i32) -> (i32, i32) {
    %c0_i32 = arith.constant 0 : i32
    %c0_i32_0 = arith.constant 0 : i32
    %c0_i32_1 = arith.constant 0 : i32
    return %c0_i32, %c0_i32_0 : i32, i32
  }
  func.func @transform_7(%arg0: i32) -> (i32, i32) {
    %c0_i32 = arith.constant 0 : i32
    %c0_i32_0 = arith.constant 0 : i32
    %c0_i32_1 = arith.constant 0 : i32
    return %c0_i32, %c0_i32_0 : i32, i32
  }
  func.func @transform_8(%arg0: i32) -> (i32, i32) {
    %c0_i32 = arith.constant 0 : i32
    %c0_i32_0 = arith.constant 0 : i32
    return %arg0, %c0_i32 : i32, i32
  }
}

</mosaic_0001>

<llo_original>
// kernel: network_forward.1
$region0: #{network_forward.1}
  #allocation0 [shape = 'u32[]', space=smem, size = 0x4, offset = 0x4, fixed_abs, tag = 'smem constant byte address 0x4 - core index']
  #allocation1 [shape = 'u32[72,128]{1,0:T(1,128)}', space=vmem, size = 0x9000, scoped, tag = 'internal scratch']
  %s0 = inlined_call_operand.vmem [shape: f32[8,117], index: 0, kind: input, shape index: {}]
  %s1 = inlined_call_operand.vmem [shape: f32[8,8], index: 1, kind: input, shape index: {}]
  %s2 = inlined_call_operand.vmem [shape: bf16[117,128], index: 2, kind: input, shape index: {}]
  %s3 = inlined_call_operand.vmem [shape: bf16[8,128], index: 3, kind: input, shape index: {}]
  %s4 = inlined_call_operand.vmem [shape: f32[3,128], index: 4, kind: input, shape index: {}]
  %s5 = inlined_call_operand.hbm [shape: bf16[2,128,128], index: 5, kind: input, shape index: {}]
  %s6 = inlined_call_operand.vmem [shape: bf16[128,78], index: 6, kind: input, shape index: {}]
  %s7 = inlined_call_operand.vmem [shape: f32[1,78], index: 7, kind: input, shape index: {}]
  %s8 = inlined_call_operand.hbm [shape: f32[8,78], index: 8, kind: output, shape index: {}]
  %s9 = sld [smem:[#allocation0]]
  $region46: #{network_forward.1} parent=0
    _
  %s11 = ssub.s32 1, %s9
  %s12 = scalar_select 0, %s11, %s9
  $region1: #{network_forward.1} parent=0
    #allocation2 [shape = 'u8[65536]{0}', space=vmem, size = 0x10000, scoped, tag = 'input window, operand 5, single buffered']
    #allocation3 [shape = 's32[1]{0}', space=sflag, size = 0x4, scoped, tag = 'scoped memory for network_forward.1']
    #allocation4 [shape = 's32[1]{0}', space=sflag, size = 0x4, scoped, tag = 'scoped memory for network_forward.1']
    #allocation5 [shape = 'u8[4096]{0}', space=vmem, size = 0x1000, scoped, tag = 'output window, operand 0, single buffered']
    %13 = vsyncpa [#allocation3], 0
    %14 = vsyncpa [#allocation4], 0
    // Predicated region
    $region2: #{network_forward.1} parent=1 // pred_check
      _
    $region3: #{network_forward.1} parent=1 // pred_check_branch
      %16 = sbr.rel (0) target = $region5
    $region4: #{network_forward.1} parent=1 // pred_region
      _
    $region5: #{network_forward.1} parent=1 // pred_fallthru
      _
    // Predicated region
    $region6: #{network_forward.1} parent=1 // pred_check
      _
    $region7: #{network_forward.1} parent=1 // pred_check_branch
      %18 = sbr.rel (0) target = $region9
    $region8: #{network_forward.1} parent=1 // pred_region
      _
    $region9: #{network_forward.1} parent=1 // pred_fallthru
      _
    // Predicated region
    $region10: #{network_forward.1} parent=1 // pred_check
      _
    $region11: #{network_forward.1} parent=1 // pred_check_branch
      %20 = sbr.rel (0) target = $region13
    $region12: #{network_forward.1} parent=1 // pred_region
      _
    $region13: #{network_forward.1} parent=1 // pred_fallthru
      _
    // Predicated region
    $region14: #{network_forward.1} parent=1 // pred_check
      _
    $region15: #{network_forward.1} parent=1 // pred_check_branch
      %22 = sbr.rel (0) target = $region17
    $region16: #{network_forward.1} parent=1 // pred_region
      _
    $region17: #{network_forward.1} parent=1 // pred_fallthru
      _
    // Predicated region
    $region18: #{network_forward.1} parent=1 // pred_check
      _
    $region19: #{network_forward.1} parent=1 // pred_check_branch
      %24 = sbr.rel (0) target = $region21
    $region20: #{network_forward.1} parent=1 // pred_region
      _
    $region21: #{network_forward.1} parent=1 // pred_fallthru
      _
    // Predicated region
    $region22: #{network_forward.1} parent=1 // pred_check
      _
    $region23: #{network_forward.1} parent=1 // pred_check_branch
      %26 = sbr.rel (0) target = $region25
    $region24: #{network_forward.1} parent=1 // pred_region
      %28 = vsyncadd [#allocation3], 0
      %s29 = sshll.u32 %s5, 4
      %s30 = int_to_ptr.hbm [resolvable:$true] %s29
      %s31 = sshll.u32 [#allocation2], 4
      %s32 = int_to_ptr.vmem [resolvable:$true] %s31
      %37 = dma.hbm_to_vmem [thread:$0]  %s30, 2048, %s32, [#allocation3], 64, 64, 4
    $region25: #{network_forward.1} parent=1 // pred_fallthru
      _
    // Predicated region
    $region26: #{network_forward.1} parent=1 // pred_check
      _
    $region27: #{network_forward.1} parent=1 // pred_check_branch
      %39 = sbr.rel (0) target = $region29
    $region28: #{network_forward.1} parent=1 // pred_region
      _
    $region29: #{network_forward.1} parent=1 // pred_fallthru
      _
    // Predicated region
    $region30: #{network_forward.1} parent=1 // pred_check
      _
    $region31: #{network_forward.1} parent=1 // pred_check_branch
      %41 = sbr.rel (0) target = $region33
    $region32: #{network_forward.1} parent=1 // pred_region
      _
    $region33: #{network_forward.1} parent=1 // pred_fallthru
      _
    // Predicated region
    $region34: #{network_forward.1} parent=1 // pred_check
      _
    $region35: #{network_forward.1} parent=1 // pred_check_branch
      %43 = sbr.rel (0) target = $region37
    $region36: #{network_forward.1} parent=1 // pred_region
      %45 = dma.done [#allocation3], 2048
    $region37: #{network_forward.1} parent=1 // pred_fallthru
      _
    %v47 = vld [vmem:[%s0] sm:$0xff]
    %v48 = vpack.c.bf16 %v47, %v47
    %v49 = vld [vmem:[%s2] sm:$0xf]
    %v50 = vld [vmem:[%s2 + $0x4] sm:$0xf]
    %v51 = vld [vmem:[%s2 + $0x8] sm:$0xf]
    %v52 = vld [vmem:[%s2 + $0xc] sm:$0xf]
    %v53 = vld [vmem:[%s2 + $0x10] sm:$0xf]
    %v54 = vld [vmem:[%s2 + $0x14] sm:$0xf]
    %v55 = vld [vmem:[%s2 + $0x18] sm:$0xf]
    %v56 = vld [vmem:[%s2 + $0x1c] sm:$0xf]
    %v57 = vld [vmem:[%s2 + $0x20] sm:$0xf]
    %v58 = vld [vmem:[%s2 + $0x24] sm:$0xf]
    %v59 = vld [vmem:[%s2 + $0x28] sm:$0xf]
    %v60 = vld [vmem:[%s2 + $0x2c] sm:$0xf]
    %v61 = vld [vmem:[%s2 + $0x30] sm:$0xf]
    %v62 = vld [vmem:[%s2 + $0x34] sm:$0xf]
    %v63 = vld [vmem:[%s2 + $0x38] sm:$0x7]
    %v64 = vld [vmem:[%s1] sm:$0xff]
    %v65 = vpack.c.bf16 %v64, %v64
    %v66 = vld [vmem:[%s3] sm:$0xf]
    %vm67 = vcmask 64512
    %v69 = vsel %vm67, %v65, 0
    %vm71 = vcmask 1043456
    %v73 = vsel %vm71, %v66, 0
    %75 = vmatpush.bf16.msra.mxu0 0
    %76 = vmatpush.bf16.msra.mxu0 0
    %77 = vmatpush.bf16.msra.mxu0 0
    %78 = vmatpush.bf16.msra.mxu0 0
    %79 = vmatpush.bf16.msra.mxu0 0
    %80 = vmatpush.bf16.msra.mxu0 0
    %81 = vmatpush.bf16.msra.mxu0 0
    %82 = vmatpush.bf16.msra.mxu0 %v73
    %83 = vmatmul.bf16.gmra.mxu0 %v69
    %v84 = vpop.f32.mrf.mxu0
    %v85 = vadd.f32 0.0, %v84
    %v86 = vpop.f32.mrf.mxu0
    %87 = vdwg.mxu0
    %v103 = vunpack.c.l.b16 %v49
    %v104 = vunpack.c.l.b16 %v50
    %v105 = vunpack.c.l.b16 %v51
    %v106 = vunpack.c.l.b16 %v52
    %v107 = vunpack.c.l.b16 %v53
    %v108 = vunpack.c.l.b16 %v54
    %v109 = vunpack.c.l.b16 %v55
    %v110 = vunpack.c.l.b16 %v56
    %v111 = vunpack.c.l.b16 %v57
    %v112 = vunpack.c.l.b16 %v58
    %v113 = vunpack.c.l.b16 %v59
    %v114 = vunpack.c.l.b16 %v60
    %v115 = vunpack.c.l.b16 %v61
    %v116 = vunpack.c.l.b16 %v62
    %v117 = vunpack.c.l.b16 %v63
    %v118 = vpack.c.b16 %v104, %v103
    %v119 = vpack.c.b16 %v106, %v105
    %v120 = vpack.c.b16 %v108, %v107
    %v121 = vpack.c.b16 %v110, %v109
    %v122 = vpack.c.b16 %v112, %v111
    %v123 = vpack.c.b16 %v114, %v113
    %v124 = vpack.c.b16 %v116, %v115
    %v125 = vpack.c.b16 %v117, %v117
    %vm133 = vcmask 957440
    %v135 = vsel %vm133, %v48, 0
    %vm137 = vcmask 1041408
    %vm138 = vcmask 1042432
    %v139 = vsel %vm137, 4294967295, 65535
    %v140 = vsel %vm138, %v139, 0
    %v142 = vand.u32 %v125, %v140
    %144 = vmatpush.bf16.msra.mxu0 %v142
    %145 = vmatpush.bf16.msra.mxu0 %v124
    %146 = vmatpush.bf16.msra.mxu0 %v123
    %147 = vmatpush.bf16.msra.mxu0 %v122
    %148 = vmatpush.bf16.msra.mxu0 %v121
    %149 = vmatpush.bf16.msra.mxu0 %v120
    %150 = vmatpush.bf16.msra.mxu0 %v119
    %151 = vmatpush.bf16.msra.mxu0 %v118
    %152 = vmatmul.bf16.gmra.mxu0 %v135
    %v153 = vpop.f32.mrf.mxu0
    %v154 = vadd.f32 %v85, %v153
    %v155 = vpop.f32.mrf.mxu0
    %156 = vdwg.mxu0
    %v157 = vld [vmem:[%s4] sm:$0x1]
    %v158 = vperm.slane %v157, 0
    %v159 = vadd.f32 %v154, %v158
    %v160 = vmul.f32 %v159, 0.01
    %v161 = vmax.f32 %v159, %v160
    %v162 = vpack.c.bf16 %v161, %v161
    %v163 = vld [vmem:[#allocation2] sm:$0xf]
    %v164 = vld [vmem:[#allocation2 + $0x4] sm:$0xf]
    %v165 = vld [vmem:[#allocation2 + $0x8] sm:$0xf]
    %v166 = vld [vmem:[#allocation2 + $0xc] sm:$0xf]
    %v167 = vld [vmem:[#allocation2 + $0x10] sm:$0xf]
    %v168 = vld [vmem:[#allocation2 + $0x14] sm:$0xf]
    %v169 = vld [vmem:[#allocation2 + $0x18] sm:$0xf]
    %v170 = vld [vmem:[#allocation2 + $0x1c] sm:$0xf]
    %v171 = vld [vmem:[#allocation2 + $0x20] sm:$0xf]
    %v172 = vld [vmem:[#allocation2 + $0x24] sm:$0xf]
    %v173 = vld [vmem:[#allocation2 + $0x28] sm:$0xf]
    %v174 = vld [vmem:[#allocation2 + $0x2c] sm:$0xf]
    %v175 = vld [vmem:[#allocation2 + $0x30] sm:$0xf]
    %v176 = vld [vmem:[#allocation2 + $0x34] sm:$0xf]
    %v177 = vld [vmem:[#allocation2 + $0x38] sm:$0xf]
    %v178 = vld [vmem:[#allocation2 + $0x3c] sm:$0xf]
    %v179 = vld [vmem:[%s4 + $0x1] sm:$0x1]
    %v180 = vperm.slane %v179, 0
    %v197 = vunpack.c.l.b16 %v163
    %v198 = vunpack.c.l.b16 %v164
    %v199 = vunpack.c.l.b16 %v165
    %v200 = vunpack.c.l.b16 %v166
    %v201 = vunpack.c.l.b16 %v167
    %v202 = vunpack.c.l.b16 %v168
    %v203 = vunpack.c.l.b16 %v169
    %v204 = vunpack.c.l.b16 %v170
    %v205 = vunpack.c.l.b16 %v171
    %v206 = vunpack.c.l.b16 %v172
    %v207 = vunpack.c.l.b16 %v173
    %v208 = vunpack.c.l.b16 %v174
    %v209 = vunpack.c.l.b16 %v175
    %v210 = vunpack.c.l.b16 %v176
    %v211 = vunpack.c.l.b16 %v177
    %v212 = vunpack.c.l.b16 %v178
    %v213 = vpack.c.b16 %v198, %v197
    %v214 = vpack.c.b16 %v200, %v199
    %v215 = vpack.c.b16 %v202, %v201
    %v216 = vpack.c.b16 %v204, %v203
    %v217 = vpack.c.b16 %v206, %v205
    %v218 = vpack.c.b16 %v208, %v207
    %v219 = vpack.c.b16 %v210, %v209
    %v220 = vpack.c.b16 %v212, %v211
    %229 = vmatpush.bf16.msra.mxu0 %v220
    %230 = vmatpush.bf16.msra.mxu0 %v219
    %231 = vmatpush.bf16.msra.mxu0 %v218
    %232 = vmatpush.bf16.msra.mxu0 %v217
    %233 = vmatpush.bf16.msra.mxu0 %v216
    %234 = vmatpush.bf16.msra.mxu0 %v215
    %235 = vmatpush.bf16.msra.mxu0 %v214
    %236 = vmatpush.bf16.msra.mxu0 %v213
    %237 = vmatmul.bf16.gmra.mxu0 %v162
    %v238 = vpop.f32.mrf.mxu0
    %v239 = vadd.f32 %v180, %v238
    %v240 = vpop.f32.mrf.mxu0
    %241 = vdwg.mxu0
    %v242 = vmul.f32 %v239, 0.01
    %v243 = vmax.f32 %v239, %v242
    %v244 = vpack.c.bf16 %v243, %v243
    %s245 = scalar_lea.vmem [#allocation2], 64
    %v246 = vld [vmem:[%s245] sm:$0xf]
    %v247 = vld [vmem:[%s245 + $0x4] sm:$0xf]
    %v248 = vld [vmem:[%s245 + $0x8] sm:$0xf]
    %v249 = vld [vmem:[%s245 + $0xc] sm:$0xf]
    %v250 = vld [vmem:[%s245 + $0x10] sm:$0xf]
    %v251 = vld [vmem:[%s245 + $0x14] sm:$0xf]
    %v252 = vld [vmem:[%s245 + $0x18] sm:$0xf]
    %v253 = vld [vmem:[%s245 + $0x1c] sm:$0xf]
    %v254 = vld [vmem:[%s245 + $0x20] sm:$0xf]
    %v255 = vld [vmem:[%s245 + $0x24] sm:$0xf]
    %v256 = vld [vmem:[%s245 + $0x28] sm:$0xf]
    %v257 = vld [vmem:[%s245 + $0x2c] sm:$0xf]
    %v258 = vld [vmem:[%s245 + $0x30] sm:$0xf]
    %v259 = vld [vmem:[%s245 + $0x34] sm:$0xf]
    %v260 = vld [vmem:[%s245 + $0x38] sm:$0xf]
    %v261 = vld [vmem:[%s245 + $0x3c] sm:$0xf]
    %v262 = vld [vmem:[%s4 + $0x2] sm:$0x1]
    %v263 = vperm.slane %v262, 0
    %v280 = vunpack.c.l.b16 %v246
    %v281 = vunpack.c.l.b16 %v247
    %v282 = vunpack.c.l.b16 %v248
    %v283 = vunpack.c.l.b16 %v249
    %v284 = vunpack.c.l.b16 %v250
    %v285 = vunpack.c.l.b16 %v251
    %v286 = vunpack.c.l.b16 %v252
    %v287 = vunpack.c.l.b16 %v253
    %v288 = vunpack.c.l.b16 %v254
    %v289 = vunpack.c.l.b16 %v255
    %v290 = vunpack.c.l.b16 %v256
    %v291 = vunpack.c.l.b16 %v257
    %v292 = vunpack.c.l.b16 %v258
    %v293 = vunpack.c.l.b16 %v259
    %v294 = vunpack.c.l.b16 %v260
    %v295 = vunpack.c.l.b16 %v261
    %v296 = vpack.c.b16 %v281, %v280
    %v297 = vpack.c.b16 %v283, %v282
    %v298 = vpack.c.b16 %v285, %v284
    %v299 = vpack.c.b16 %v287, %v286
    %v300 = vpack.c.b16 %v289, %v288
    %v301 = vpack.c.b16 %v291, %v290
    %v302 = vpack.c.b16 %v293, %v292
    %v303 = vpack.c.b16 %v295, %v294
    %312 = vmatpush.bf16.msra.mxu0 %v303
    %313 = vmatpush.bf16.msra.mxu0 %v302
    %314 = vmatpush.bf16.msra.mxu0 %v301
    %315 = vmatpush.bf16.msra.mxu0 %v300
    %316 = vmatpush.bf16.msra.mxu0 %v299
    %317 = vmatpush.bf16.msra.mxu0 %v298
    %318 = vmatpush.bf16.msra.mxu0 %v297
    %319 = vmatpush.bf16.msra.mxu0 %v296
    %320 = vmatmul.bf16.gmra.mxu0 %v244
    %v321 = vpop.f32.mrf.mxu0
    %v322 = vadd.f32 %v263, %v321
    %v323 = vpop.f32.mrf.mxu0
    %324 = vdwg.mxu0
    %v325 = vmul.f32 %v322, 0.01
    %v326 = vmax.f32 %v322, %v325
    %v327 = vpack.c.bf16 %v326, %v326
    %v328 = vld [vmem:[%s6] sm:$0xf]
    %v329 = vld [vmem:[%s6 + $0x4] sm:$0xf]
    %v330 = vld [vmem:[%s6 + $0x8] sm:$0xf]
    %v331 = vld [vmem:[%s6 + $0xc] sm:$0xf]
    %v332 = vld [vmem:[%s6 + $0x10] sm:$0xf]
    %v333 = vld [vmem:[%s6 + $0x14] sm:$0xf]
    %v334 = vld [vmem:[%s6 + $0x18] sm:$0xf]
    %v335 = vld [vmem:[%s6 + $0x1c] sm:$0xf]
    %v336 = vld [vmem:[%s6 + $0x20] sm:$0xf]
    %v337 = vld [vmem:[%s6 + $0x24] sm:$0xf]
    %v338 = vld [vmem:[%s6 + $0x28] sm:$0xf]
    %v339 = vld [vmem:[%s6 + $0x2c] sm:$0xf]
    %v340 = vld [vmem:[%s6 + $0x30] sm:$0xf]
    %v341 = vld [vmem:[%s6 + $0x34] sm:$0xf]
    %v342 = vld [vmem:[%s6 + $0x38] sm:$0xf]
    %v343 = vld [vmem:[%s6 + $0x3c] sm:$0xf]
    %v344 = vld [vmem:[%s7] sm:$0x1]
    %v346 = vperm.slane %v344, 0
    %v364 = vunpack.c.l.b16 %v328
    %v365 = vunpack.c.l.b16 %v329
    %v366 = vunpack.c.l.b16 %v330
    %v367 = vunpack.c.l.b16 %v331
    %v368 = vunpack.c.l.b16 %v332
    %v369 = vunpack.c.l.b16 %v333
    %v370 = vunpack.c.l.b16 %v334
    %v371 = vunpack.c.l.b16 %v335
    %v372 = vunpack.c.l.b16 %v336
    %v373 = vunpack.c.l.b16 %v337
    %v374 = vunpack.c.l.b16 %v338
    %v375 = vunpack.c.l.b16 %v339
    %v376 = vunpack.c.l.b16 %v340
    %v377 = vunpack.c.l.b16 %v341
    %v378 = vunpack.c.l.b16 %v342
    %v379 = vunpack.c.l.b16 %v343
    %v380 = vpack.c.b16 %v365, %v364
    %v381 = vpack.c.b16 %v367, %v366
    %v382 = vpack.c.b16 %v369, %v368
    %v383 = vpack.c.b16 %v371, %v370
    %v384 = vpack.c.b16 %v373, %v372
    %v385 = vpack.c.b16 %v375, %v374
    %v386 = vpack.c.b16 %v377, %v376
    %v387 = vpack.c.b16 %v379, %v378
    %396 = vmatpush.bf16.msra.mxu0 %v387
    %397 = vmatpush.bf16.msra.mxu0 %v386
    %398 = vmatpush.bf16.msra.mxu0 %v385
    %399 = vmatpush.bf16.msra.mxu0 %v384
    %400 = vmatpush.bf16.msra.mxu0 %v383
    %401 = vmatpush.bf16.msra.mxu0 %v382
    %402 = vmatpush.bf16.msra.mxu0 %v381
    %403 = vmatpush.bf16.msra.mxu0 %v380
    %404 = vmatmul.bf16.gmra.mxu0 %v327
    %v405 = vpop.f32.mrf.mxu0
    %v406 = vadd.f32 %v346, %v405
    %v407 = vpop.f32.mrf.mxu0
    %408 = vdwg.mxu0
    %vm409 = vcmask 637952
    %410 = vst.msk [vmem:[#allocation5] sm:$0xff] %vm409, %v406
    // Predicated region
    $region38: #{network_forward.1} parent=1 // pred_check
      _
    $region39: #{network_forward.1} parent=1 // pred_check_branch
      %412 = sbr.rel (0) target = $region41
    $region40: #{network_forward.1} parent=1 // pred_region
      %414 = vsyncadd [#allocation4], 0
      %s416 = sshll.u32 [#allocation5], 4
      %s417 = int_to_ptr.vmem [resolvable:$true] %s416
      %s418 = sshll.u32 %s8, 4
      %s419 = int_to_ptr.hbm [resolvable:$true] %s418
      %421 = dma.vmem_to_hbm [thread:$0]  %s417, 128, %s419, [#allocation4]
    $region41: #{network_forward.1} parent=1 // pred_fallthru
      _
    // Predicated region
    $region42: #{network_forward.1} parent=1 // pred_check
      _
    $region43: #{network_forward.1} parent=1 // pred_check_branch
      %423 = sbr.rel (0) target = $region45
    $region44: #{network_forward.1} parent=1 // pred_region
      %425 = dma.done [#allocation4], 128
    $region45: #{network_forward.1} parent=1 // pred_fallthru
      _
    %426 = vsyncpa [#allocation3], 1
    %427 = vsyncpa [#allocation4], 1

</llo_original>
